<compile_context>
chip_gen: v7x
topology: tpu7x:2x2x1
jax: 0.10.0
libtpu: 0.0.40
codegen_flags: <defaults>
</compile_context>

<pallas_src>
import functools
import math

import jax
import jax.numpy as jnp
import numpy as np
from jax.experimental import pallas as pl
from jax.experimental.pallas import tpu as pltpu


def _round_up(x: int, m: int) -> int:
    return ((x + m - 1) // m) * m


# ------------------------------ Pallas kernel -------------------------------

def _fused_mlp_kernel(x_ref, w_ref, b_ref, o_ref, *, num_layers: int, use_tanh: bool):
    """Fused forward of the whole MLP for one batch tile.

    x_ref: (TB, P)   w_ref: (L, P, P)   b_ref: (L, 1, P)   o_ref: (TB, P)
    All feature dims are padded to P (multiple of 128); pad lanes carry zeros.
    """
    h = x_ref[...].astype(jnp.float32)
    for l in range(num_layers):                        # static unroll over layers
        h = jnp.dot(h, w_ref[l], preferred_element_type=jnp.float32) + b_ref[l]
        if l < num_layers - 1:
            # nn.LeakyReLU default negative_slope = 0.01 (equivalent max form).
            h = jnp.maximum(h, jnp.float32(0.01) * h)
        elif use_tanh:
            h = jnp.tanh(h)                            # EUP slot: ~free next to MXU
    o_ref[...] = h.astype(o_ref.dtype)


# ------------------------------ Python wrapper -------------------------------

@functools.partial(jax.jit, static_argnames=("use_tanh",))
def basic_fully_connected_net(x, layers, use_tanh: bool = False):
    """Forward pass of BasicFullyConnectedNet via one fused Pallas kernel.

    layers: list of (W, b) with W of shape (in_features, out_features).
    """
    batch, dim = x.shape
    num_layers = len(layers)
    feat_dims = [dim] + [w.shape[1] for (w, _) in layers]
    out_dim = feat_dims[-1]
    P = _round_up(max(feat_dims), 128)                 # single lane-dense padded width

    # Stack + zero-pad weights / biases (pad rows/cols/bias are 0 => no leakage).
    ws, bs = [], []
    for (w, b) in layers:
        din, dout = w.shape
        ws.append(jnp.pad(w.astype(jnp.float32), ((0, P - din), (0, P - dout))))
        bs.append(jnp.pad(b.astype(jnp.float32), (0, P - dout))[None, :])
    w_stack = jnp.stack(ws)                            # (L, P, P)
    b_stack = jnp.stack(bs)                            # (L, 1, P)

    # Batch tile: multiple of 8 sublanes; keep resident weights + double-buffered
    # (TB, P) in/out activation blocks under a v7x-safe VMEM budget (~48 MiB).
    vmem_budget = 48 * 1024 * 1024
    w_bytes = num_layers * P * P * 4 + num_layers * P * 4
    per_row_bytes = 2 * 2 * P * 4                      # in + out blocks, 2-deep, f32
    max_tb = max(8, ((vmem_budget - w_bytes) // per_row_bytes) // 8 * 8)
    tb = int(min(512, max_tb, _round_up(batch, 8)))
    tb = max(8, (tb // 8) * 8)
    b_pad = _round_up(batch, tb)
    n_tiles = b_pad // tb

    x_pad = jnp.zeros((b_pad, P), x.dtype).at[:batch, :dim].set(x)

    flops = 2 * b_pad * P * P * num_layers
    transcendentals = b_pad * P if use_tanh else 0
    bytes_accessed = (x_pad.size + w_stack.size + b_stack.size + b_pad * P) * 4

    vmem_limit = int(min(
        64 * 1024 * 1024,
        max(32 * 1024 * 1024, w_bytes + 8 * tb * P * 4 + (4 << 20))))

    kernel = functools.partial(
        _fused_mlp_kernel, num_layers=num_layers, use_tanh=use_tanh)

    out_pad = pl.pallas_call(
        kernel,
        out_shape=jax.ShapeDtypeStruct((b_pad, P), x.dtype),
        grid_spec=pltpu.PrefetchScalarGridSpec(
            num_scalar_prefetch=0,
            grid=(n_tiles,),
            in_specs=[
                pl.BlockSpec((tb, P), lambda i: (i, 0)),                # batch-tiled acts
                pl.BlockSpec((num_layers, P, P), lambda i: (0, 0, 0)),  # weights resident
                pl.BlockSpec((num_layers, 1, P), lambda i: (0, 0, 0)),  # biases resident
            ],
            out_specs=pl.BlockSpec((tb, P), lambda i: (i, 0)),          # lane-dense output
        ),
        compiler_params=pltpu.CompilerParams(
            dimension_semantics=("parallel",),         # shard batch tiles over TCs
            vmem_limit_bytes=vmem_limit,
        ),
        cost_estimate=pl.CostEstimate(
            flops=flops,
            transcendentals=transcendentals,
            bytes_accessed=bytes_accessed),
    )(x_pad, w_stack, b_stack)

    return out_pad[:batch, :out_dim]


# --------------------------- Parameter construction --------------------------

def init_linear_params(key, in_features, out_features, dtype=jnp.float32):
    """Mimic torch.nn.Linear default init (uniform +/- 1/sqrt(fan_in)).

    Returns W already transposed to (in_features, out_features).
    """
    kw, kb = jax.random.split(key)
    bound = 1.0 / math.sqrt(in_features)
    w = jax.random.uniform(kw, (in_features, out_features), dtype, -bound, bound)
    b = jax.random.uniform(kb, (out_features,), dtype, -bound, bound)
    return w, b


def build_basic_fc_net_params(key, dim, depth, hidden_dim=256, out_dim=None):
    """Layer list [(W, b), ...] matching BasicFullyConnectedNet (default flags)."""
    out_dim = dim if out_dim is None else out_dim
    keys = jax.random.split(key, depth + 2)
    layers = [init_linear_params(keys[0], dim, hidden_dim)]
    for d in range(depth):
        layers.append(init_linear_params(keys[1 + d], hidden_dim, hidden_dim))
    layers.append(init_linear_params(keys[depth + 1], hidden_dim, out_dim))
    return layers


# Pure-JAX reference for a sanity check.
def reference_forward(x, layers, use_tanh=False):
    h = x
    num_layers = len(layers)
    for l, (w, b) in enumerate(layers):
        h = h @ w + b
        if l < num_layers - 1:
            h = jnp.where(h >= 0, h, 0.01 * h)
        elif use_tanh:
            h = jnp.tanh(h)
    return h


# ----------------------------------- Main ------------------------------------

if __name__ == "__main__":
    # Small shapes consistent with the module's forward (x: (batch, dim)).
    batch, dim, depth, hidden_dim = 2, 8, 2, 32

    key = jax.random.PRNGKey(0)
    kx, kp = jax.random.split(key)
    x = jax.random.normal(kx, (batch, dim), dtype=jnp.float32)

    layers = build_basic_fc_net_params(kp, dim=dim, depth=depth, hidden_dim=hidden_dim)

    out = basic_fully_connected_net(x, layers, use_tanh=False)
    out = jax.block_until_ready(out)

    ref = jax.block_until_ready(reference_forward(x, layers, use_tanh=False))
    np.testing.assert_allclose(np.asarray(out), np.asarray(ref), rtol=1e-5, atol=1e-5)

    # Also exercise the tanh tail once (same fused kernel, different flag).
    out_t = jax.block_until_ready(basic_fully_connected_net(x, layers, use_tanh=True))
    ref_t = jax.block_until_ready(reference_forward(x, layers, use_tanh=True))
    np.testing.assert_allclose(np.asarray(out_t), np.asarray(ref_t), rtol=1e-5, atol=1e-5)

    assert out.shape == (batch, dim)
    print("KERNEL_OK")
</pallas_src>

<mosaic_0001>
module attributes {stable_mosaic.version = 11 : i64} {
  func.func @_fused_mlp_kernel(%arg0: i32, %arg1: memref<8x128xf32, #tpu.memory_space<vmem>>, %arg2: memref<4x128x128xf32, #tpu.memory_space<vmem>>, %arg3: memref<4x1x128xf32, #tpu.memory_space<vmem>>, %arg4: memref<8x128xf32, #tpu.memory_space<vmem>>) attributes {dimension_semantics = [#tpu.dimension_semantics<parallel>], iteration_bounds = array<i64: 1>, scalar_prefetch = 0 : i64, scratch_operands = 0 : i64, tpu.core_type = #tpu.core_type<tc>, window_params = [{transform_indices = @transform_0, window_bounds = array<i64: 8, 128>}, {pipeline_mode = #tpu.pipeline_mode<synchronous>, transform_indices = @transform_1, window_bounds = array<i64: 4, 128, 128>}, {pipeline_mode = #tpu.pipeline_mode<synchronous>, transform_indices = @transform_2, window_bounds = array<i64: 4, 1, 128>}, {transform_indices = @transform_3, window_bounds = array<i64: 8, 128>}]} {
    %c0 = arith.constant 0 : index
    %c0_0 = arith.constant 0 : index
    %0 = vector.load %arg1[%c0, %c0_0] : memref<8x128xf32, #tpu.memory_space<vmem>>, vector<8x128xf32>
    %c0_1 = arith.constant 0 : index
    %c0_2 = arith.constant 0 : index
    %c0_3 = arith.constant 0 : index
    %1 = vector.load %arg2[%c0_1, %c0_2, %c0_3] : memref<4x128x128xf32, #tpu.memory_space<vmem>>, vector<1x128x128xf32>
    %2 = vector.shape_cast %1 : vector<1x128x128xf32> to vector<128x128xf32>
    %cst = arith.constant dense<0.000000e+00> : vector<8x128xf32>
    %3 = tpu.matmul %0, %2, %cst {dimension_numbers = #tpu.dot_dimension_numbers<[1], [0], [0], [1], [0, 0, 1, 1], [], []>} : vector<8x128xf32>, vector<128x128xf32>, vector<8x128xf32> -> vector<8x128xf32>
    %c0_4 = arith.constant 0 : index
    %c0_5 = arith.constant 0 : index
    %c0_6 = arith.constant 0 : index
    %4 = vector.load %arg3[%c0_4, %c0_5, %c0_6] : memref<4x1x128xf32, #tpu.memory_space<vmem>>, vector<1x1x128xf32>
    %5 = vector.shape_cast %4 : vector<1x1x128xf32> to vector<1x128xf32>
    %6 = vector.broadcast %5 : vector<1x128xf32> to vector<8x128xf32>
    %7 = arith.addf %3, %6 : vector<8x128xf32>
    %cst_7 = arith.constant 0.00999999977 : f32
    %8 = vector.broadcast %cst_7 : f32 to vector<8x128xf32>
    %9 = arith.mulf %8, %7 : vector<8x128xf32>
    %10 = arith.maximumf %7, %9 : vector<8x128xf32>
    %c1 = arith.constant 1 : index
    %c0_8 = arith.constant 0 : index
    %c0_9 = arith.constant 0 : index
    %11 = vector.load %arg2[%c1, %c0_8, %c0_9] : memref<4x128x128xf32, #tpu.memory_space<vmem>>, vector<1x128x128xf32>
    %12 = vector.shape_cast %11 : vector<1x128x128xf32> to vector<128x128xf32>
    %cst_10 = arith.constant dense<0.000000e+00> : vector<8x128xf32>
    %13 = tpu.matmul %10, %12, %cst_10 {dimension_numbers = #tpu.dot_dimension_numbers<[1], [0], [0], [1], [0, 0, 1, 1], [], []>} : vector<8x128xf32>, vector<128x128xf32>, vector<8x128xf32> -> vector<8x128xf32>
    %c1_11 = arith.constant 1 : index
    %c0_12 = arith.constant 0 : index
    %c0_13 = arith.constant 0 : index
    %14 = vector.load %arg3[%c1_11, %c0_12, %c0_13] : memref<4x1x128xf32, #tpu.memory_space<vmem>>, vector<1x1x128xf32>
    %15 = vector.shape_cast %14 : vector<1x1x128xf32> to vector<1x128xf32>
    %16 = vector.broadcast %15 : vector<1x128xf32> to vector<8x128xf32>
    %17 = arith.addf %13, %16 : vector<8x128xf32>
    %cst_14 = arith.constant 0.00999999977 : f32
    %18 = vector.broadcast %cst_14 : f32 to vector<8x128xf32>
    %19 = arith.mulf %18, %17 : vector<8x128xf32>
    %20 = arith.maximumf %17, %19 : vector<8x128xf32>
    %c2 = arith.constant 2 : index
    %c0_15 = arith.constant 0 : index
    %c0_16 = arith.constant 0 : index
    %21 = vector.load %arg2[%c2, %c0_15, %c0_16] : memref<4x128x128xf32, #tpu.memory_space<vmem>>, vector<1x128x128xf32>
    %22 = vector.shape_cast %21 : vector<1x128x128xf32> to vector<128x128xf32>
    %cst_17 = arith.constant dense<0.000000e+00> : vector<8x128xf32>
    %23 = tpu.matmul %20, %22, %cst_17 {dimension_numbers = #tpu.dot_dimension_numbers<[1], [0], [0], [1], [0, 0, 1, 1], [], []>} : vector<8x128xf32>, vector<128x128xf32>, vector<8x128xf32> -> vector<8x128xf32>
    %c2_18 = arith.constant 2 : index
    %c0_19 = arith.constant 0 : index
    %c0_20 = arith.constant 0 : index
    %24 = vector.load %arg3[%c2_18, %c0_19, %c0_20] : memref<4x1x128xf32, #tpu.memory_space<vmem>>, vector<1x1x128xf32>
    %25 = vector.shape_cast %24 : vector<1x1x128xf32> to vector<1x128xf32>
    %26 = vector.broadcast %25 : vector<1x128xf32> to vector<8x128xf32>
    %27 = arith.addf %23, %26 : vector<8x128xf32>
    %cst_21 = arith.constant 0.00999999977 : f32
    %28 = vector.broadcast %cst_21 : f32 to vector<8x128xf32>
    %29 = arith.mulf %28, %27 : vector<8x128xf32>
    %30 = arith.maximumf %27, %29 : vector<8x128xf32>
    %c3 = arith.constant 3 : index
    %c0_22 = arith.constant 0 : index
    %c0_23 = arith.constant 0 : index
    %31 = vector.load %arg2[%c3, %c0_22, %c0_23] : memref<4x128x128xf32, #tpu.memory_space<vmem>>, vector<1x128x128xf32>
    %32 = vector.shape_cast %31 : vector<1x128x128xf32> to vector<128x128xf32>
    %cst_24 = arith.constant dense<0.000000e+00> : vector<8x128xf32>
    %33 = tpu.matmul %30, %32, %cst_24 {dimension_numbers = #tpu.dot_dimension_numbers<[1], [0], [0], [1], [0, 0, 1, 1], [], []>} : vector<8x128xf32>, vector<128x128xf32>, vector<8x128xf32> -> vector<8x128xf32>
    %c3_25 = arith.constant 3 : index
    %c0_26 = arith.constant 0 : index
    %c0_27 = arith.constant 0 : index
    %34 = vector.load %arg3[%c3_25, %c0_26, %c0_27] : memref<4x1x128xf32, #tpu.memory_space<vmem>>, vector<1x1x128xf32>
    %35 = vector.shape_cast %34 : vector<1x1x128xf32> to vector<1x128xf32>
    %36 = vector.broadcast %35 : vector<1x128xf32> to vector<8x128xf32>
    %37 = arith.addf %33, %36 : vector<8x128xf32>
    %c0_28 = arith.constant 0 : index
    %c0_29 = arith.constant 0 : index
    %38 = vector.load %arg4[%c0_28, %c0_29] : memref<8x128xf32, #tpu.memory_space<vmem>>, vector<8x128xf32>
    tpu.vector_store %arg4[%c0_28, %c0_29], %37 {strides = array<i32>} : memref<8x128xf32, #tpu.memory_space<vmem>>, vector<8x128xf32>,
    return
  }
  func.func @transform_0(%arg0: i32) -> (i32, i32) {
    %c0_i32 = arith.constant 0 : i32
    %c0_i32_0 = arith.constant 0 : i32
    return %arg0, %c0_i32 : i32, i32
  }
  func.func @transform_1(%arg0: i32) -> (i32, i32, i32) {
    %c0_i32 = arith.constant 0 : i32
    %c0_i32_0 = arith.constant 0 : i32
    %c0_i32_1 = arith.constant 0 : i32
    %c0_i32_2 = arith.constant 0 : i32
    return %c0_i32, %c0_i32_0, %c0_i32_1 : i32, i32, i32
  }
  func.func @transform_2(%arg0: i32) -> (i32, i32, i32) {
    %c0_i32 = arith.constant 0 : i32
    %c0_i32_0 = arith.constant 0 : i32
    %c0_i32_1 = arith.constant 0 : i32
    %c0_i32_2 = arith.constant 0 : i32
    return %c0_i32, %c0_i32_0, %c0_i32_1 : i32, i32, i32
  }
  func.func @transform_3(%arg0: i32) -> (i32, i32) {
    %c0_i32 = arith.constant 0 : i32
    %c0_i32_0 = arith.constant 0 : i32
    return %arg0, %c0_i32 : i32, i32
  }
}

</mosaic_0001>

<llo_original>
// kernel: basic_fully_connected_net.1
$region0: #{basic_fully_connected_net.1}
  #allocation0 [shape = 'u32[]', space=smem, size = 0x4, offset = 0x4, fixed_abs, tag = 'smem constant byte address 0x4 - core index']
  #allocation1 [shape = 'u32[144,128]{1,0:T(1,128)}', space=vmem, size = 0x12000, scoped, tag = 'internal scratch']
  %s0 = inlined_call_operand.vmem [shape: f32[8,128], index: 0, kind: input, shape index: {}]
  %s1 = inlined_call_operand.vmem [shape: f32[4,128,128], index: 1, kind: input, shape index: {}]
  %s2 = inlined_call_operand.vmem [shape: f32[4,1,128], index: 2, kind: input, shape index: {}]
  %s3 = inlined_call_operand.vmem [shape: f32[8,128], index: 3, kind: output, shape index: {}]
  %s4 = sld [smem:[#allocation0]]
  $region22: #{basic_fully_connected_net.1} parent=0
    _
  %s6 = ssub.s32 1, %s4
  %s7 = scalar_select 0, %s6, %s4
  // Predicated region
  $region2: #{basic_fully_connected_net.1} parent=0 // pred_check
    _
  $region3: #{basic_fully_connected_net.1} parent=0 // pred_check_branch
    %9 = sbr.rel (0) target = $region5
  $region4: #{basic_fully_connected_net.1} parent=0 // pred_region
    _
  $region5: #{basic_fully_connected_net.1} parent=0 // pred_fallthru
    _
  // Predicated region
  $region6: #{basic_fully_connected_net.1} parent=0 // pred_check
    _
  $region7: #{basic_fully_connected_net.1} parent=0 // pred_check_branch
    %11 = sbr.rel (0) target = $region9
  $region8: #{basic_fully_connected_net.1} parent=0 // pred_region
    _
  $region9: #{basic_fully_connected_net.1} parent=0 // pred_fallthru
    _
  // Predicated region
  $region10: #{basic_fully_connected_net.1} parent=0 // pred_check
    _
  $region11: #{basic_fully_connected_net.1} parent=0 // pred_check_branch
    %13 = sbr.rel (0) target = $region13
  $region12: #{basic_fully_connected_net.1} parent=0 // pred_region
    _
  $region13: #{basic_fully_connected_net.1} parent=0 // pred_fallthru
    _
  %v14 = vld [vmem:[%s0] sm:$0xff]
  %v15 = vld [vmem:[%s1] sm:$0xff]
  %v16 = vld [vmem:[%s1 + $0x8] sm:$0xff]
  %v17 = vld [vmem:[%s1 + $0x10] sm:$0xff]
  %v18 = vld [vmem:[%s1 + $0x18] sm:$0xff]
  %v19 = vld [vmem:[%s1 + $0x20] sm:$0xff]
  %v20 = vld [vmem:[%s1 + $0x28] sm:$0xff]
  %v21 = vld [vmem:[%s1 + $0x30] sm:$0xff]
  %v22 = vld [vmem:[%s1 + $0x38] sm:$0xff]
  %v23 = vld [vmem:[%s1 + $0x40] sm:$0xff]
  %v24 = vld [vmem:[%s1 + $0x48] sm:$0xff]
  %v25 = vld [vmem:[%s1 + $0x50] sm:$0xff]
  %v26 = vld [vmem:[%s1 + $0x58] sm:$0xff]
  %v27 = vld [vmem:[%s1 + $0x60] sm:$0xff]
  %v28 = vld [vmem:[%s1 + $0x68] sm:$0xff]
  %v29 = vld [vmem:[%s1 + $0x70] sm:$0xff]
  %v30 = vld [vmem:[%s1 + $0x78] sm:$0xff]
  %v31 = vld [vmem:[%s2] sm:$0x1]
  %v33 = vlaneseq
  %v34 = vshrl.u32 %v33, 7
  %v35 = vsub.s32 0, %v34
  %v36 = vrot.slane %v31, %v35
  %38 = vmatprep.subr.mxu0 0.0
  %39 = vmatpush1.msra.mxu0 %v15
  %40 = vmatprep.subr.mxu0 0.0
  %41 = vmatpush1.msra.mxu0 %v16
  %42 = vmatprep.subr.mxu0 0.0
  %43 = vmatpush1.msra.mxu0 %v17
  %44 = vmatprep.subr.mxu0 0.0
  %45 = vmatpush1.msra.mxu0 %v18
  %46 = vmatprep.subr.mxu0 0.0
  %47 = vmatpush1.msra.mxu0 %v19
  %48 = vmatprep.subr.mxu0 0.0
  %49 = vmatpush1.msra.mxu0 %v20
  %50 = vmatprep.subr.mxu0 0.0
  %51 = vmatpush1.msra.mxu0 %v21
  %52 = vmatprep.subr.mxu0 0.0
  %53 = vmatpush1.msra.mxu0 %v22
  %54 = vmatprep.subr.mxu0 0.0
  %55 = vmatpush1.msra.mxu0 %v23
  %56 = vmatprep.subr.mxu0 0.0
  %57 = vmatpush1.msra.mxu0 %v24
  %58 = vmatprep.subr.mxu0 0.0
  %59 = vmatpush1.msra.mxu0 %v25
  %60 = vmatprep.subr.mxu0 0.0
  %61 = vmatpush1.msra.mxu0 %v26
  %62 = vmatprep.subr.mxu0 0.0
  %63 = vmatpush1.msra.mxu0 %v27
  %64 = vmatprep.subr.mxu0 0.0
  %65 = vmatpush1.msra.mxu0 %v28
  %66 = vmatprep.subr.mxu0 0.0
  %67 = vmatpush1.msra.mxu0 %v29
  %68 = vmatprep.subr.mxu0 0.0
  %69 = vmatpush1.msra.mxu0 %v30
  %70 = vmatprep.subr.mxu0 0.0
  %71 = vmatpush1.msra.mxu0 0.0
  %72 = vmatprep.subr.mxu0 0.0
  %73 = vmatpush1.msra.mxu0 0.0
  %74 = vmatprep.subr.mxu0 0.0
  %75 = vmatpush1.msra.mxu0 0.0
  %76 = vmatprep.subr.mxu0 0.0
  %77 = vmatpush1.msra.mxu0 0.0
  %78 = vmatprep.subr.mxu0 0.0
  %79 = vmatpush1.msra.mxu0 0.0
  %80 = vmatprep.subr.mxu0 0.0
  %81 = vmatpush1.msra.mxu0 0.0
  %82 = vmatprep.subr.mxu0 0.0
  %83 = vmatpush1.msra.mxu0 0.0
  %84 = vmatprep.subr.mxu0 0.0
  %85 = vmatpush1.msra.mxu0 0.0
  %86 = vmatprep.subr.mxu0 0.0
  %87 = vmatpush1.msra.mxu0 0.0
  %88 = vmatprep.subr.mxu0 0.0
  %89 = vmatpush1.msra.mxu0 0.0
  %90 = vmatprep.subr.mxu0 0.0
  %91 = vmatpush1.msra.mxu0 0.0
  %92 = vmatprep.subr.mxu0 0.0
  %93 = vmatpush1.msra.mxu0 0.0
  %94 = vmatprep.subr.mxu0 0.0
  %95 = vmatpush1.msra.mxu0 0.0
  %96 = vmatprep.subr.mxu0 0.0
  %97 = vmatpush1.msra.mxu0 0.0
  %98 = vmatprep.subr.mxu0 0.0
  %99 = vmatpush1.msra.mxu0 0.0
  %100 = vmatprep.subr.mxu0 0.0
  %101 = vmatpush1.msra.mxu0 0.0
  %102 = vmatprep.mubr.f32.mxu0 0.0
  %103 = vmatmul.mubr.f32.gmra.mrb[0].mxu0 %v14
  %v104 = vpop.f32.mrb[0].mxu0
  %v105 = vadd.f32 %v36, %v104
  %v106 = vpop.f32.mrb[0].mxu0
  %107 = vdwg.mxu0
  %v108 = vmul.f32 %v105, 0.01
  %v109 = vmax.f32 %v105, %v108
  %s110 = scalar_lea.vmem %s1, 128
  %v111 = vld [vmem:[%s110] sm:$0xff]
  %v112 = vld [vmem:[%s110 + $0x8] sm:$0xff]
  %v113 = vld [vmem:[%s110 + $0x10] sm:$0xff]
  %v114 = vld [vmem:[%s110 + $0x18] sm:$0xff]
  %v115 = vld [vmem:[%s110 + $0x20] sm:$0xff]
  %v116 = vld [vmem:[%s110 + $0x28] sm:$0xff]
  %v117 = vld [vmem:[%s110 + $0x30] sm:$0xff]
  %v118 = vld [vmem:[%s110 + $0x38] sm:$0xff]
  %v119 = vld [vmem:[%s110 + $0x40] sm:$0xff]
  %v120 = vld [vmem:[%s110 + $0x48] sm:$0xff]
  %v121 = vld [vmem:[%s110 + $0x50] sm:$0xff]
  %v122 = vld [vmem:[%s110 + $0x58] sm:$0xff]
  %v123 = vld [vmem:[%s110 + $0x60] sm:$0xff]
  %v124 = vld [vmem:[%s110 + $0x68] sm:$0xff]
  %v125 = vld [vmem:[%s110 + $0x70] sm:$0xff]
  %v126 = vld [vmem:[%s110 + $0x78] sm:$0xff]
  %s127 = scalar_lea.vmem %s2, 1
  %v128 = vld [vmem:[%s127] sm:$0x1]
  %v130 = vlaneseq
  %v131 = vshrl.u32 %v130, 7
  %v132 = vsub.s32 0, %v131
  %v133 = vrot.slane %v128, %v132
  %135 = vmatprep.subr.mxu0 0.0
  %136 = vmatpush1.msra.mxu0 %v111
  %137 = vmatprep.subr.mxu0 0.0
  %138 = vmatpush1.msra.mxu0 %v112
  %139 = vmatprep.subr.mxu0 0.0
  %140 = vmatpush1.msra.mxu0 %v113
  %141 = vmatprep.subr.mxu0 0.0
  %142 = vmatpush1.msra.mxu0 %v114
  %143 = vmatprep.subr.mxu0 0.0
  %144 = vmatpush1.msra.mxu0 %v115
  %145 = vmatprep.subr.mxu0 0.0
  %146 = vmatpush1.msra.mxu0 %v116
  %147 = vmatprep.subr.mxu0 0.0
  %148 = vmatpush1.msra.mxu0 %v117
  %149 = vmatprep.subr.mxu0 0.0
  %150 = vmatpush1.msra.mxu0 %v118
  %151 = vmatprep.subr.mxu0 0.0
  %152 = vmatpush1.msra.mxu0 %v119
  %153 = vmatprep.subr.mxu0 0.0
  %154 = vmatpush1.msra.mxu0 %v120
  %155 = vmatprep.subr.mxu0 0.0
  %156 = vmatpush1.msra.mxu0 %v121
  %157 = vmatprep.subr.mxu0 0.0
  %158 = vmatpush1.msra.mxu0 %v122
  %159 = vmatprep.subr.mxu0 0.0
  %160 = vmatpush1.msra.mxu0 %v123
  %161 = vmatprep.subr.mxu0 0.0
  %162 = vmatpush1.msra.mxu0 %v124
  %163 = vmatprep.subr.mxu0 0.0
  %164 = vmatpush1.msra.mxu0 %v125
  %165 = vmatprep.subr.mxu0 0.0
  %166 = vmatpush1.msra.mxu0 %v126
  %167 = vmatprep.subr.mxu0 0.0
  %168 = vmatpush1.msra.mxu0 0.0
  %169 = vmatprep.subr.mxu0 0.0
  %170 = vmatpush1.msra.mxu0 0.0
  %171 = vmatprep.subr.mxu0 0.0
  %172 = vmatpush1.msra.mxu0 0.0
  %173 = vmatprep.subr.mxu0 0.0
  %174 = vmatpush1.msra.mxu0 0.0
  %175 = vmatprep.subr.mxu0 0.0
  %176 = vmatpush1.msra.mxu0 0.0
  %177 = vmatprep.subr.mxu0 0.0
  %178 = vmatpush1.msra.mxu0 0.0
  %179 = vmatprep.subr.mxu0 0.0
  %180 = vmatpush1.msra.mxu0 0.0
  %181 = vmatprep.subr.mxu0 0.0
  %182 = vmatpush1.msra.mxu0 0.0
  %183 = vmatprep.subr.mxu0 0.0
  %184 = vmatpush1.msra.mxu0 0.0
  %185 = vmatprep.subr.mxu0 0.0
  %186 = vmatpush1.msra.mxu0 0.0
  %187 = vmatprep.subr.mxu0 0.0
  %188 = vmatpush1.msra.mxu0 0.0
  %189 = vmatprep.subr.mxu0 0.0
  %190 = vmatpush1.msra.mxu0 0.0
  %191 = vmatprep.subr.mxu0 0.0
  %192 = vmatpush1.msra.mxu0 0.0
  %193 = vmatprep.subr.mxu0 0.0
  %194 = vmatpush1.msra.mxu0 0.0
  %195 = vmatprep.subr.mxu0 0.0
  %196 = vmatpush1.msra.mxu0 0.0
  %197 = vmatprep.subr.mxu0 0.0
  %198 = vmatpush1.msra.mxu0 0.0
  %199 = vmatprep.mubr.f32.mxu0 0.0
  %200 = vmatmul.mubr.f32.gmra.mrb[0].mxu0 %v109
  %v201 = vpop.f32.mrb[0].mxu0
  %v202 = vadd.f32 %v133, %v201
  %v203 = vpop.f32.mrb[0].mxu0
  %204 = vdwg.mxu0
  %v205 = vmul.f32 %v202, 0.01
  %v206 = vmax.f32 %v202, %v205
  %s207 = scalar_lea.vmem %s1, 256
  %v208 = vld [vmem:[%s207] sm:$0xff]
  %v209 = vld [vmem:[%s207 + $0x8] sm:$0xff]
  %v210 = vld [vmem:[%s207 + $0x10] sm:$0xff]
  %v211 = vld [vmem:[%s207 + $0x18] sm:$0xff]
  %v212 = vld [vmem:[%s207 + $0x20] sm:$0xff]
  %v213 = vld [vmem:[%s207 + $0x28] sm:$0xff]
  %v214 = vld [vmem:[%s207 + $0x30] sm:$0xff]
  %v215 = vld [vmem:[%s207 + $0x38] sm:$0xff]
  %v216 = vld [vmem:[%s207 + $0x40] sm:$0xff]
  %v217 = vld [vmem:[%s207 + $0x48] sm:$0xff]
  %v218 = vld [vmem:[%s207 + $0x50] sm:$0xff]
  %v219 = vld [vmem:[%s207 + $0x58] sm:$0xff]
  %v220 = vld [vmem:[%s207 + $0x60] sm:$0xff]
  %v221 = vld [vmem:[%s207 + $0x68] sm:$0xff]
  %v222 = vld [vmem:[%s207 + $0x70] sm:$0xff]
  %v223 = vld [vmem:[%s207 + $0x78] sm:$0xff]
  %s224 = scalar_lea.vmem %s2, 2
  %v225 = vld [vmem:[%s224] sm:$0x1]
  %v227 = vlaneseq
  %v228 = vshrl.u32 %v227, 7
  %v229 = vsub.s32 0, %v228
  %v230 = vrot.slane %v225, %v229
  %232 = vmatprep.subr.mxu0 0.0
  %233 = vmatpush1.msra.mxu0 %v208
  %234 = vmatprep.subr.mxu0 0.0
  %235 = vmatpush1.msra.mxu0 %v209
  %236 = vmatprep.subr.mxu0 0.0
  %237 = vmatpush1.msra.mxu0 %v210
  %238 = vmatprep.subr.mxu0 0.0
  %239 = vmatpush1.msra.mxu0 %v211
  %240 = vmatprep.subr.mxu0 0.0
  %241 = vmatpush1.msra.mxu0 %v212
  %242 = vmatprep.subr.mxu0 0.0
  %243 = vmatpush1.msra.mxu0 %v213
  %244 = vmatprep.subr.mxu0 0.0
  %245 = vmatpush1.msra.mxu0 %v214
  %246 = vmatprep.subr.mxu0 0.0
  %247 = vmatpush1.msra.mxu0 %v215
  %248 = vmatprep.subr.mxu0 0.0
  %249 = vmatpush1.msra.mxu0 %v216
  %250 = vmatprep.subr.mxu0 0.0
  %251 = vmatpush1.msra.mxu0 %v217
  %252 = vmatprep.subr.mxu0 0.0
  %253 = vmatpush1.msra.mxu0 %v218
  %254 = vmatprep.subr.mxu0 0.0
  %255 = vmatpush1.msra.mxu0 %v219
  %256 = vmatprep.subr.mxu0 0.0
  %257 = vmatpush1.msra.mxu0 %v220
  %258 = vmatprep.subr.mxu0 0.0
  %259 = vmatpush1.msra.mxu0 %v221
  %260 = vmatprep.subr.mxu0 0.0
  %261 = vmatpush1.msra.mxu0 %v222
  %262 = vmatprep.subr.mxu0 0.0
  %263 = vmatpush1.msra.mxu0 %v223
  %264 = vmatprep.subr.mxu0 0.0
  %265 = vmatpush1.msra.mxu0 0.0
  %266 = vmatprep.subr.mxu0 0.0
  %267 = vmatpush1.msra.mxu0 0.0
  %268 = vmatprep.subr.mxu0 0.0
  %269 = vmatpush1.msra.mxu0 0.0
  %270 = vmatprep.subr.mxu0 0.0
  %271 = vmatpush1.msra.mxu0 0.0
  %272 = vmatprep.subr.mxu0 0.0
  %273 = vmatpush1.msra.mxu0 0.0
  %274 = vmatprep.subr.mxu0 0.0
  %275 = vmatpush1.msra.mxu0 0.0
  %276 = vmatprep.subr.mxu0 0.0
  %277 = vmatpush1.msra.mxu0 0.0
  %278 = vmatprep.subr.mxu0 0.0
  %279 = vmatpush1.msra.mxu0 0.0
  %280 = vmatprep.subr.mxu0 0.0
  %281 = vmatpush1.msra.mxu0 0.0
  %282 = vmatprep.subr.mxu0 0.0
  %283 = vmatpush1.msra.mxu0 0.0
  %284 = vmatprep.subr.mxu0 0.0
  %285 = vmatpush1.msra.mxu0 0.0
  %286 = vmatprep.subr.mxu0 0.0
  %287 = vmatpush1.msra.mxu0 0.0
  %288 = vmatprep.subr.mxu0 0.0
  %289 = vmatpush1.msra.mxu0 0.0
  %290 = vmatprep.subr.mxu0 0.0
  %291 = vmatpush1.msra.mxu0 0.0
  %292 = vmatprep.subr.mxu0 0.0
  %293 = vmatpush1.msra.mxu0 0.0
  %294 = vmatprep.subr.mxu0 0.0
  %295 = vmatpush1.msra.mxu0 0.0
  %296 = vmatprep.mubr.f32.mxu0 0.0
  %297 = vmatmul.mubr.f32.gmra.mrb[0].mxu0 %v206
  %v298 = vpop.f32.mrb[0].mxu0
  %v299 = vadd.f32 %v230, %v298
  %v300 = vpop.f32.mrb[0].mxu0
  %301 = vdwg.mxu0
  %v302 = vmul.f32 %v299, 0.01
  %v303 = vmax.f32 %v299, %v302
  %s304 = scalar_lea.vmem %s1, 384
  %v305 = vld [vmem:[%s304] sm:$0xff]
  %v306 = vld [vmem:[%s304 + $0x8] sm:$0xff]
  %v307 = vld [vmem:[%s304 + $0x10] sm:$0xff]
  %v308 = vld [vmem:[%s304 + $0x18] sm:$0xff]
  %v309 = vld [vmem:[%s304 + $0x20] sm:$0xff]
  %v310 = vld [vmem:[%s304 + $0x28] sm:$0xff]
  %v311 = vld [vmem:[%s304 + $0x30] sm:$0xff]
  %v312 = vld [vmem:[%s304 + $0x38] sm:$0xff]
  %v313 = vld [vmem:[%s304 + $0x40] sm:$0xff]
  %v314 = vld [vmem:[%s304 + $0x48] sm:$0xff]
  %v315 = vld [vmem:[%s304 + $0x50] sm:$0xff]
  %v316 = vld [vmem:[%s304 + $0x58] sm:$0xff]
  %v317 = vld [vmem:[%s304 + $0x60] sm:$0xff]
  %v318 = vld [vmem:[%s304 + $0x68] sm:$0xff]
  %v319 = vld [vmem:[%s304 + $0x70] sm:$0xff]
  %v320 = vld [vmem:[%s304 + $0x78] sm:$0xff]
  %s321 = scalar_lea.vmem %s2, 3
  %v322 = vld [vmem:[%s321] sm:$0x1]
  %v324 = vlaneseq
  %v325 = vshrl.u32 %v324, 7
  %v326 = vsub.s32 0, %v325
  %v327 = vrot.slane %v322, %v326
  %329 = vmatprep.subr.mxu0 0.0
  %330 = vmatpush1.msra.mxu0 %v305
  %331 = vmatprep.subr.mxu0 0.0
  %332 = vmatpush1.msra.mxu0 %v306
  %333 = vmatprep.subr.mxu0 0.0
  %334 = vmatpush1.msra.mxu0 %v307
  %335 = vmatprep.subr.mxu0 0.0
  %336 = vmatpush1.msra.mxu0 %v308
  %337 = vmatprep.subr.mxu0 0.0
  %338 = vmatpush1.msra.mxu0 %v309
  %339 = vmatprep.subr.mxu0 0.0
  %340 = vmatpush1.msra.mxu0 %v310
  %341 = vmatprep.subr.mxu0 0.0
  %342 = vmatpush1.msra.mxu0 %v311
  %343 = vmatprep.subr.mxu0 0.0
  %344 = vmatpush1.msra.mxu0 %v312
  %345 = vmatprep.subr.mxu0 0.0
  %346 = vmatpush1.msra.mxu0 %v313
  %347 = vmatprep.subr.mxu0 0.0
  %348 = vmatpush1.msra.mxu0 %v314
  %349 = vmatprep.subr.mxu0 0.0
  %350 = vmatpush1.msra.mxu0 %v315
  %351 = vmatprep.subr.mxu0 0.0
  %352 = vmatpush1.msra.mxu0 %v316
  %353 = vmatprep.subr.mxu0 0.0
  %354 = vmatpush1.msra.mxu0 %v317
  %355 = vmatprep.subr.mxu0 0.0
  %356 = vmatpush1.msra.mxu0 %v318
  %357 = vmatprep.subr.mxu0 0.0
  %358 = vmatpush1.msra.mxu0 %v319
  %359 = vmatprep.subr.mxu0 0.0
  %360 = vmatpush1.msra.mxu0 %v320
  %361 = vmatprep.subr.mxu0 0.0
  %362 = vmatpush1.msra.mxu0 0.0
  %363 = vmatprep.subr.mxu0 0.0
  %364 = vmatpush1.msra.mxu0 0.0
  %365 = vmatprep.subr.mxu0 0.0
  %366 = vmatpush1.msra.mxu0 0.0
  %367 = vmatprep.subr.mxu0 0.0
  %368 = vmatpush1.msra.mxu0 0.0
  %369 = vmatprep.subr.mxu0 0.0
  %370 = vmatpush1.msra.mxu0 0.0
  %371 = vmatprep.subr.mxu0 0.0
  %372 = vmatpush1.msra.mxu0 0.0
  %373 = vmatprep.subr.mxu0 0.0
  %374 = vmatpush1.msra.mxu0 0.0
  %375 = vmatprep.subr.mxu0 0.0
  %376 = vmatpush1.msra.mxu0 0.0
  %377 = vmatprep.subr.mxu0 0.0
  %378 = vmatpush1.msra.mxu0 0.0
  %379 = vmatprep.subr.mxu0 0.0
  %380 = vmatpush1.msra.mxu0 0.0
  %381 = vmatprep.subr.mxu0 0.0
  %382 = vmatpush1.msra.mxu0 0.0
  %383 = vmatprep.subr.mxu0 0.0
  %384 = vmatpush1.msra.mxu0 0.0
  %385 = vmatprep.subr.mxu0 0.0
  %386 = vmatpush1.msra.mxu0 0.0
  %387 = vmatprep.subr.mxu0 0.0
  %388 = vmatpush1.msra.mxu0 0.0
  %389 = vmatprep.subr.mxu0 0.0
  %390 = vmatpush1.msra.mxu0 0.0
  %391 = vmatprep.subr.mxu0 0.0
  %392 = vmatpush1.msra.mxu0 0.0
  %393 = vmatprep.mubr.f32.mxu0 0.0
  %394 = vmatmul.mubr.f32.gmra.mrb[0].mxu0 %v303
  %v395 = vpop.f32.mrb[0].mxu0
  %v396 = vadd.f32 %v327, %v395
  %v397 = vpop.f32.mrb[0].mxu0
  %398 = vdwg.mxu0
  %399 = vst [vmem:[%s3] sm:$0xff] %v396
  // Predicated region
  $region14: #{basic_fully_connected_net.1} parent=0 // pred_check
    _
  $region15: #{basic_fully_connected_net.1} parent=0 // pred_check_branch
    %401 = sbr.rel (0) target = $region17
  $region16: #{basic_fully_connected_net.1} parent=0 // pred_region
    _
  $region17: #{basic_fully_connected_net.1} parent=0 // pred_fallthru
    _
  // Predicated region
  $region18: #{basic_fully_connected_net.1} parent=0 // pred_check
    _
  $region19: #{basic_fully_connected_net.1} parent=0 // pred_check_branch
    %403 = sbr.rel (0) target = $region21
  $region20: #{basic_fully_connected_net.1} parent=0 // pred_region
    _
  $region21: #{basic_fully_connected_net.1} parent=0 // pred_fallthru
    _

</llo_original>
